<compile_context>
chip_gen: v6e
topology: v6e:2x2x1
jax: 0.10.0
libtpu: 0.0.40
codegen_flags: <defaults>
</compile_context>

<pallas_src>
import jax
import jax.numpy as jnp
from jax import lax
from jax.experimental import pallas as pl
from jax.experimental.pallas import tpu as pltpu

_LANE = 128
_HW_TILE_CAP = 4096  # lanes; keeps iota + one-hot temporaries ~4 MiB


def _reg_l1_gather_kernel(feat_ref, ind_ref, out_ref):
    # feat_ref : VMEM [C, THW]    native dtype (one batch, one HW tile; HW on lanes)
    # ind_ref  : VMEM [1, K_pad]  int32 (one batch; padded entries are -1)
    # out_ref  : VMEM [C, K_pad]  f32   gathered features for this (batch, HW tile)
    thw = feat_ref.shape[-1]
    kp = ind_ref.shape[-1]
    h = pl.program_id(1)

    # One-hot in [THW, K_pad] orientation (the shape the MXU needs directly).
    # Loop-invariant iota; only the tiny [1, K_pad] ind vector is shifted per step.
    local_ind = ind_ref[...] - h * thw                          # [1, K_pad] int32
    pos = lax.broadcasted_iota(jnp.int32, (thw, kp), 0)         # [THW, K_pad]
    hit = (pos == local_ind).astype(feat_ref.dtype)             # exact in bf16/f32

    # Gather-reduce on the MXU: [C, THW] @ [THW, K_pad] -> [C, K_pad], f32 acc.
    out_ref[...] = lax.dot_general(
        feat_ref[...], hit,
        dimension_numbers=(((1,), (0,)), ((), ())),
        preferred_element_type=jnp.float32)


def _choose_hw_tile(hw_pad):
    # Whole-HW tile for typical CenterNet heads; otherwise largest 128-aligned
    # tile <= cap that divides the (already lane-padded) HW.
    if hw_pad <= _HW_TILE_CAP:
        return hw_pad
    t = _HW_TILE_CAP
    while hw_pad % t:
        t -= _LANE
    return t


def reg_l1_loss(output, ind, target, reg_mask):
    """output: [B, C, H, W], ind: [B, K] int, target: [B, K, C],
    reg_mask: [B, K] (0/1). Returns scalar f32 loss."""
    B, C, H, W = output.shape
    HW = H * W
    K = ind.shape[1]

    # Free view of contiguous NCHW (no transpose, no dtype upcast): HW on lanes.
    feat = output.reshape(B, C, HW)

    hw_pad = -(-HW // _LANE) * _LANE
    if hw_pad != HW:
        feat = jnp.pad(feat, ((0, 0), (0, 0), (0, hw_pad - HW)))
    thw = _choose_hw_tile(hw_pad)
    n_hw = hw_pad // thw

    # Pad K to a lane multiple; padded indices are -1 so they never hit.
    k_pad = max(_LANE, -(-K // _LANE) * _LANE)
    ind_p = jnp.full((B, 1, k_pad), -1, dtype=jnp.int32)
    ind_p = ind_p.at[:, 0, :K].set(ind.astype(jnp.int32))

    partials = pl.pallas_call(
        _reg_l1_gather_kernel,
        out_shape=jax.ShapeDtypeStruct((B, n_hw, C, k_pad), jnp.float32),
        grid_spec=pltpu.PrefetchScalarGridSpec(
            num_scalar_prefetch=0,
            grid=(B, n_hw),
            in_specs=[
                pl.BlockSpec((None, C, thw), lambda b, h: (b, 0, h)),
                pl.BlockSpec((None, 1, k_pad), lambda b, h: (b, 0, 0)),
            ],
            out_specs=pl.BlockSpec((None, None, C, k_pad),
                                   lambda b, h: (b, h, 0, 0)),
        ),
        compiler_params=pltpu.CompilerParams(
            # Every grid point writes a distinct output block -> both axes are
            # independent; HW-splitting keeps both v7x TensorCores busy even
            # when B == 1.  No accumulator carry, no scratch.
            dimension_semantics=("parallel", "parallel"),
        ),
    )(feat, ind_p)

    # Tiny epilogue, fused by XLA: sum HW-tile partials, drop K padding,
    # abs-diff against target, normalize by reg_mask.sum() (per the spec's
    # forward, the numerator is NOT masked).
    pred = jnp.sum(partials, axis=1)[:, :, :K]          # [B, C, K] f32
    pred = jnp.transpose(pred, (0, 2, 1))                # [B, K, C]
    denom = jnp.sum(reg_mask.astype(jnp.float32)) + 0.0001
    return jnp.sum(jnp.abs(pred - target.astype(jnp.float32))) / denom


if __name__ == "__main__":
    key = jax.random.PRNGKey(0)
    B, C, H, W, K = 2, 4, 16, 16, 8
    k1, k2, k3, k4 = jax.random.split(key, 4)

    output = jax.random.normal(k1, (B, C, H, W), dtype=jnp.float32)
    ind = jax.random.randint(k2, (B, K), 0, H * W, dtype=jnp.int32)
    target = jax.random.normal(k3, (B, K, C), dtype=jnp.float32)
    reg_mask = (jax.random.uniform(k4, (B, K)) > 0.3).astype(jnp.float32)

    loss = reg_l1_loss(output, ind, target, reg_mask)
    loss = jax.block_until_ready(loss)

    # Pure-JAX reference (mirrors the PyTorch forward exactly).
    feat_nhwc = jnp.transpose(output, (0, 2, 3, 1)).reshape(B, H * W, C)
    pred_ref = jnp.take_along_axis(feat_nhwc, ind[:, :, None], axis=1)
    ref = jnp.sum(jnp.abs(pred_ref - target)) / (reg_mask.sum() + 0.0001)
    assert abs(float(loss) - float(ref)) < 1e-3 * (1.0 + abs(float(ref))), (
        float(loss), float(ref))

    print("KERNEL_OK")
</pallas_src>

<mosaic_0001>
module attributes {stable_mosaic.version = 11 : i64} {
  func.func @_reg_l1_gather_kernel(%arg0: i32, %arg1: i32, %arg2: memref<1x4x256xf32, #tpu.memory_space<vmem>>, %arg3: memref<1x1x128xi32, #tpu.memory_space<vmem>>, %arg4: memref<1x1x4x128xf32, #tpu.memory_space<vmem>>) attributes {dimension_semantics = [#tpu.dimension_semantics<parallel>, #tpu.dimension_semantics<parallel>], iteration_bounds = array<i64: 2, 1>, scalar_prefetch = 0 : i64, scratch_operands = 0 : i64, tpu.core_type = #tpu.core_type<tc>, window_params = [{transform_indices = @transform_0, window_bounds = array<i64: 1, 4, 256>}, {transform_indices = @transform_1, window_bounds = array<i64: 1, 1, 128>}, {transform_indices = @transform_2, window_bounds = array<i64: 1, 1, 4, 128>}]} {
    %c0 = arith.constant 0 : index
    %c0_0 = arith.constant 0 : index
    %c0_1 = arith.constant 0 : index
    %0 = vector.load %arg3[%c0, %c0_0, %c0_1] : memref<1x1x128xi32, #tpu.memory_space<vmem>>, vector<1x1x128xi32>
    %1 = vector.shape_cast %0 : vector<1x1x128xi32> to vector<1x128xi32>
    %c256_i32 = arith.constant 256 : i32
    %2 = arith.muli %arg1, %c256_i32 : i32
    %3 = vector.broadcast %2 : i32 to vector<1x128xi32>
    %4 = arith.subi %1, %3 : vector<1x128xi32>
    %5 = tpu.iota {dimensions = array<i32: 0>} : vector<256x128xi32>
    %6 = vector.broadcast %4 : vector<1x128xi32> to vector<256x128xi32>
    %7 = arith.cmpi eq, %5, %6 : vector<256x128xi32>
    %8 = arith.extui %7 : vector<256x128xi1> to vector<256x128xi32>
    %9 = arith.sitofp %8 : vector<256x128xi32> to vector<256x128xf32>
    %c0_2 = arith.constant 0 : index
    %c0_3 = arith.constant 0 : index
    %c0_4 = arith.constant 0 : index
    %10 = vector.load %arg2[%c0_2, %c0_3, %c0_4] : memref<1x4x256xf32, #tpu.memory_space<vmem>>, vector<1x4x256xf32>
    %11 = vector.shape_cast %10 : vector<1x4x256xf32> to vector<4x256xf32>
    %cst = arith.constant dense<0.000000e+00> : vector<4x128xf32>
    %12 = tpu.matmul %11, %9, %cst {dimension_numbers = #tpu.dot_dimension_numbers<[1], [0], [0], [1], [0, 0, 1, 1], [], []>} : vector<4x256xf32>, vector<256x128xf32>, vector<4x128xf32> -> vector<4x128xf32>
    %c0_5 = arith.constant 0 : index
    %c0_6 = arith.constant 0 : index
    %c0_7 = arith.constant 0 : index
    %c0_8 = arith.constant 0 : index
    %13 = vector.load %arg4[%c0_5, %c0_6, %c0_7, %c0_8] : memref<1x1x4x128xf32, #tpu.memory_space<vmem>>, vector<1x1x4x128xf32>
    %14 = vector.shape_cast %13 : vector<1x1x4x128xf32> to vector<4x128xf32>
    %15 = vector.shape_cast %12 : vector<4x128xf32> to vector<1x1x4x128xf32>
    tpu.vector_store %arg4[%c0_5, %c0_6, %c0_7, %c0_8], %15 {strides = array<i32>} : memref<1x1x4x128xf32, #tpu.memory_space<vmem>>, vector<1x1x4x128xf32>,
    return
  }
  func.func @transform_0(%arg0: i32, %arg1: i32) -> (i32, i32, i32) {
    %c0_i32 = arith.constant 0 : i32
    %c0_i32_0 = arith.constant 0 : i32
    return %arg0, %c0_i32, %arg1 : i32, i32, i32
  }
  func.func @transform_1(%arg0: i32, %arg1: i32) -> (i32, i32, i32) {
    %c0_i32 = arith.constant 0 : i32
    %c0_i32_0 = arith.constant 0 : i32
    %c0_i32_1 = arith.constant 0 : i32
    return %arg0, %c0_i32, %c0_i32_0 : i32, i32, i32
  }
  func.func @transform_2(%arg0: i32, %arg1: i32) -> (i32, i32, i32, i32) {
    %c0_i32 = arith.constant 0 : i32
    %c0_i32_0 = arith.constant 0 : i32
    %c0_i32_1 = arith.constant 0 : i32
    return %arg0, %arg1, %c0_i32, %c0_i32_0 : i32, i32, i32, i32
  }
}

</mosaic_0001>

<llo_original>
// kernel: tpu_custom_call.1
$region0: #{tpu_custom_call.1}
  #allocation0 [shape = 'u32[]', space=smem, size = 0x4, offset = 0x4, fixed_abs, tag = 'smem constant byte address 0x4 - core index']
  #allocation1 [shape = 'u32[144,128]{1,0:T(1,128)}', space=vmem, size = 0x12000, scoped, tag = 'internal scratch']
  %s0 = inlined_call_operand.hbm [shape: f32[2,4,256], index: 0, kind: input, shape index: {}]
  %s1 = inlined_call_operand.hbm [shape: s32[2,1,128], index: 1, kind: input, shape index: {}]
  %s2 = inlined_call_operand.hbm [shape: f32[2,1,4,128], index: 2, kind: output, shape index: {}]
  %s3 = sld [smem:[#allocation0]]
  $region49: #{tpu_custom_call.1} parent=0
    _
  %s5 = ssub.s32 1, %s3
  %s6 = scalar_select 0, %s5, %s3
  $region1: #{tpu_custom_call.1} parent=0
    #allocation2 [shape = 'u8[8192]{0}', space=vmem, size = 0x2000, scoped, tag = 'input window, operand 0']
    #allocation3 [shape = 's32[2]{0}', space=sflag, size = 0x8, scoped, tag = 'scoped memory for tpu_custom_call.1']
    #allocation4 [shape = 's32[2]{0}', space=sflag, size = 0x8, scoped, tag = 'scoped memory for tpu_custom_call.1']
    #allocation5 [shape = 'u8[1024]{0}', space=vmem, size = 0x400, scoped, tag = 'input window, operand 1']
    #allocation6 [shape = 's32[2]{0}', space=sflag, size = 0x8, scoped, tag = 'scoped memory for tpu_custom_call.1']
    #allocation7 [shape = 'u8[4096]{0}', space=vmem, size = 0x1000, scoped, tag = 'output window, operand 0']
    %7 = vsyncpa [#allocation3], 0
    %s8 = scalar_lea.sflag [#allocation3], 1
    %9 = vsyncpa %s8, 0
    %10 = vsyncpa [#allocation6], 0
    %s11 = scalar_lea.sflag [#allocation6], 1
    %12 = vsyncpa %s11, 0
    %13 = vsyncpa [#allocation4], 0
    %s14 = scalar_lea.sflag [#allocation4], 1
    %15 = vsyncpa %s14, 0
    loop: start=0, step=1, limit=4
    $region2: #{tpu_custom_call.1} parent=1 // loop_pre_header
      _
    $region3: #{tpu_custom_call.1} parent=1 // loop_header
      %s17 = sphi 0, %s21
      %p18 = scmp.ge.s32.totalorder %s17, 4
      %s24 = sphi 0, %s36
      %s25 = sphi 0, %s32
      %s26 = sphi 0, %s24
      %s27 = sphi 0, %s25
      %s28 = sphi 0, %s26
      %s29 = sphi 0, %s27
      %s41 = sphi 0, %s43
      %s44 = sphi 0, %s41
      %s45 = sphi 0, %s44
      %s61 = sphi 0, %s45
      %s67 = sphi 0, %s69
      %s70 = sphi 0, %s67
      %s71 = sphi 0, %s70
      %s87 = sphi 0, %s71
      %s95 = sphi 0, %s97
      %s98 = sphi 0, %s95
      %s99 = sphi 0, %s98
      %s115 = sphi 0, %s99
    $region4: #{tpu_custom_call.1} parent=1 // loop_header_branch
      %20 = sbr.rel (%p18) target = $region8
    $region5: #{tpu_custom_call.1} parent=1 // loop_body
      %s22 = ssub.s32 %s17, 1
      %s23 = ssub.s32 %s17, 2
      %s30 = sadd.s32 1, %s25
      %p31 = scmp.ge.s32.totalorder %s30, 1
      %s32 = scalar_select %p31, 0, %s30
      %s33 = sadd.s32 1, %s24
      %s34 = scalar_select %p31, %s33, %s24
      %p35 = scmp.ge.s32.totalorder %s34, 2
      %s36 = scalar_select %p35, 0, %s34
      %s37 = ssub.s32 %s24, %s36
      %s38 = ssub.s32 %s25, %s32
      %s39 = sor.u32 %s37, %s38
      %p40 = scmp.eq.s32.totalorder %s39, 0
      %s42 = sadd.s32 %s41, 1
      %s43 = scalar_select %p40, %s41, %s42
      %p46 = pneg %p40
      %p47 = scmp.eq.s32.totalorder %s17, 1
      %p48 = por %p46, %p47
      %p49 = scmp.ne.s32.totalorder %s41, %s44
      %p50 = scmp.eq.s32.totalorder %s17, 0
      %p51 = por %p49, %p50
      %p52 = scmp.ne.s32.totalorder %s41, %s44
      %p53 = scmp.eq.s32.totalorder %s22, 1
      %p54 = por %p52, %p53
      %p55 = scmp.ne.s32.totalorder %s44, %s45
      %p56 = scmp.eq.s32.totalorder %s22, 0
      %p57 = por %p55, %p56
      %p58 = scmp.ne.s32.totalorder %s44, %s45
      %p59 = scmp.eq.s32.totalorder %s23, 1
      %p60 = por %p58, %p59
      %p62 = scmp.ne.s32.totalorder %s45, %s61
      %p63 = scmp.eq.s32.totalorder %s23, 0
      %p64 = por %p62, %p63
      %s65 = ssub.s32 %s24, %s36
      %p66 = scmp.eq.s32.totalorder %s65, 0
      %s68 = sadd.s32 %s67, 1
      %s69 = scalar_select %p66, %s67, %s68
      %p72 = pneg %p66
      %p73 = scmp.eq.s32.totalorder %s17, 1
      %p74 = por %p72, %p73
      %p75 = scmp.ne.s32.totalorder %s67, %s70
      %p76 = scmp.eq.s32.totalorder %s17, 0
      %p77 = por %p75, %p76
      %p78 = scmp.ne.s32.totalorder %s67, %s70
      %p79 = scmp.eq.s32.totalorder %s22, 1
      %p80 = por %p78, %p79
      %p81 = scmp.ne.s32.totalorder %s70, %s71
      %p82 = scmp.eq.s32.totalorder %s22, 0
      %p83 = por %p81, %p82
      %p84 = scmp.ne.s32.totalorder %s70, %s71
      %p85 = scmp.eq.s32.totalorder %s23, 1
      %p86 = por %p84, %p85
      %p88 = scmp.ne.s32.totalorder %s71, %s87
      %p89 = scmp.eq.s32.totalorder %s23, 0
      %p90 = por %p88, %p89
      %s91 = ssub.s32 %s24, %s36
      %s92 = ssub.s32 %s25, %s32
      %s93 = sor.u32 %s91, %s92
      %p94 = scmp.eq.s32.totalorder %s93, 0
      %s96 = sadd.s32 %s95, 1
      %s97 = scalar_select %p94, %s95, %s96
      %p100 = pneg %p94
      %p101 = scmp.eq.s32.totalorder %s17, 1
      %p102 = por %p100, %p101
      %p103 = scmp.ne.s32.totalorder %s95, %s98
      %p104 = scmp.eq.s32.totalorder %s17, 0
      %p105 = por %p103, %p104
      %p106 = scmp.ne.s32.totalorder %s95, %s98
      %p107 = scmp.eq.s32.totalorder %s22, 1
      %p108 = por %p106, %p107
      %p109 = scmp.ne.s32.totalorder %s98, %s99
      %p110 = scmp.eq.s32.totalorder %s22, 0
      %p111 = por %p109, %p110
      %p112 = scmp.ne.s32.totalorder %s98, %s99
      %p113 = scmp.eq.s32.totalorder %s23, 1
      %p114 = por %p112, %p113
      %p116 = scmp.ne.s32.totalorder %s99, %s115
      %p117 = scmp.eq.s32.totalorder %s23, 0
      %p118 = por %p116, %p117
      %p119 = scmp.le.s32.totalorder 1, %s17
      %p120 = scmp.lt.s32.totalorder %s17, 3
      %p121 = pnand %p119, %p120
      %p122 = pneg %p121
      // Predicated region
      $region9: #{tpu_custom_call.1} parent=5 // pred_check
        _
      $region10: #{tpu_custom_call.1} parent=5 // pred_check_branch
        %124 = sbr.rel (%p121) target = $region12
      $region11: #{tpu_custom_call.1} parent=5 // pred_region
        %s125 = ssub.s32 %s17, 1
      $region12: #{tpu_custom_call.1} parent=5 // pred_fallthru
        _
      %p126 = scmp.lt.s32.totalorder %s17, 2
      // Predicated region
      $region13: #{tpu_custom_call.1} parent=5 // pred_check
        %p127 = pneg %p126
      $region14: #{tpu_custom_call.1} parent=5 // pred_check_branch
        %129 = sbr.rel (%p127) target = $region16
      $region15: #{tpu_custom_call.1} parent=5 // pred_region
        // Predicated region
        $region17: #{tpu_custom_call.1} parent=15 // pred_check
          %p130 = pneg %p51
        $region18: #{tpu_custom_call.1} parent=15 // pred_check_branch
          %132 = sbr.rel (%p130) target = $region20
        $region19: #{tpu_custom_call.1} parent=15 // pred_region
          %s133 = sand.u32 %s41, 1
          %s134 = scalar_lea.sflag [#allocation3], %s133
          %s135 = sand.u32 %s41, 1
          %s136 = smul.addr %s135, 8
          %s137 = scalar_lea.vmem [#allocation2], %s136
          %s138 = smul.u32 2, %s25
          %s140 = ssub.s32 128, 128
          %141 = vsyncadd %s134, %s140
          %s142 = smul.addr %s24, 2
          %s143 = sadd.s32 %s138, %s142
          %s144 = smul.addr %s143, 64
          %s145 = scalar_lea.hbm %s0, %s144
          %s147 = sshll.u32 %s137, 4
          %s148 = int_to_ptr.vmem [resolvable:$true] %s147
          %150 = dma.hbm_to_vmem [thread:$0]  %s145, 128, %s148, %s134
        $region20: #{tpu_custom_call.1} parent=15 // pred_fallthru
          _
        // Predicated region
        $region21: #{tpu_custom_call.1} parent=15 // pred_check
          %p151 = pneg %p77
        $region22: #{tpu_custom_call.1} parent=15 // pred_check_branch
          %153 = sbr.rel (%p151) target = $region24
        $region23: #{tpu_custom_call.1} parent=15 // pred_region
          %s154 = sand.u32 %s67, 1
          %s155 = scalar_lea.sflag [#allocation6], %s154
          %s156 = sand.u32 %s67, 1
          %s157 = scalar_lea.vmem [#allocation5], %s156
          %s159 = ssub.s32 16, 16
          %160 = vsyncadd %s155, %s159
          %s161 = smul.addr %s24, 16
          %s162 = scalar_lea.hbm %s1, %s161
          %s164 = sshll.u32 %s157, 4
          %s165 = int_to_ptr.vmem [resolvable:$true] %s164
          %167 = dma.hbm_to_vmem [thread:$0]  %s162, 16, %s165, %s155
        $region24: #{tpu_custom_call.1} parent=15 // pred_fallthru
          _
      $region16: #{tpu_custom_call.1} parent=5 // pred_fallthru
        _
      %p168 = scmp.le.s32.totalorder 1, %s17
      %p169 = scmp.lt.s32.totalorder %s17, 3
      %p170 = pnand %p168, %p169
      %p171 = pneg %p170
      // Predicated region
      $region25: #{tpu_custom_call.1} parent=5 // pred_check
        _
      $region26: #{tpu_custom_call.1} parent=5 // pred_check_branch
        %173 = sbr.rel (%p170) target = $region28
      $region27: #{tpu_custom_call.1} parent=5 // pred_region
        %s174 = ssub.s32 %s17, 1
        %s175 = sand.u32 %s44, 1
        %s176 = scalar_lea.sflag [#allocation3], %s175
        %s177 = sand.u32 %s44, 1
        %s178 = smul.addr %s177, 8
        %s179 = scalar_lea.vmem [#allocation2], %s178
        // Predicated region
        $region29: #{tpu_custom_call.1} parent=27 // pred_check
          %p180 = pneg %p57
        $region30: #{tpu_custom_call.1} parent=27 // pred_check_branch
          %182 = sbr.rel (%p180) target = $region32
        $region31: #{tpu_custom_call.1} parent=27 // pred_region
          %183 = dma.done %s176, 128
        $region32: #{tpu_custom_call.1} parent=27 // pred_fallthru
          _
        %s184 = sand.u32 %s70, 1
        %s185 = scalar_lea.sflag [#allocation6], %s184
        %s186 = sand.u32 %s70, 1
        %s187 = scalar_lea.vmem [#allocation5], %s186
        // Predicated region
        $region33: #{tpu_custom_call.1} parent=27 // pred_check
          %p188 = pneg %p83
        $region34: #{tpu_custom_call.1} parent=27 // pred_check_branch
          %190 = sbr.rel (%p188) target = $region36
        $region35: #{tpu_custom_call.1} parent=27 // pred_region
          %191 = dma.done %s185, 16
        $region36: #{tpu_custom_call.1} parent=27 // pred_fallthru
          _
        %s192 = sand.u32 %s44, 1
        %s193 = scalar_lea.sflag [#allocation3], %s192
        %s194 = sand.u32 %s44, 1
        %s195 = smul.addr %s194, 8
        %s196 = scalar_lea.vmem [#allocation2], %s195
        %p197 = pneg %p57
        %p198 = pneg %p54
        %s199 = sand.u32 %s70, 1
        %s200 = scalar_lea.sflag [#allocation6], %s199
        %s201 = sand.u32 %s70, 1
        %s202 = scalar_lea.vmem [#allocation5], %s201
        %p203 = pneg %p83
        %p204 = pneg %p80
        %p205 = pneg %p111
        %p206 = pneg %p108
        %s207 = sand.u32 %s98, 1
        %s208 = scalar_lea.sflag [#allocation4], %s207
        %s209 = sand.u32 %s98, 1
        %s210 = smul.addr %s209, 4
        %s211 = scalar_lea.vmem [#allocation7], %s210
        %s212 = smul.u32 2, %s27
        %v213 = vld [vmem:[%s187] sm:$0x1]
        %s214 = smul.u32 %s27, 256
        %v215 = vstv %s214
        %v216 = vsub.s32 %v213, %v215
        %v217 = vlaneseq
        %v218 = vshrl.u32 %v217, 7
        %v219 = vadd.s32 %v218, 8
        %v220 = vadd.s32 %v218, 16
        %v221 = vadd.s32 %v218, 24
        %v222 = vadd.s32 %v218, 32
        %v223 = vadd.s32 %v218, 40
        %v224 = vadd.s32 %v218, 48
        %v225 = vadd.s32 %v218, 56
        %v226 = vadd.s32 %v218, 64
        %v227 = vadd.s32 %v218, 72
        %v228 = vadd.s32 %v218, 80
        %v229 = vadd.s32 %v218, 88
        %v230 = vadd.s32 %v218, 96
        %v231 = vadd.s32 %v218, 104
        %v232 = vadd.s32 %v218, 112
        %v233 = vadd.s32 %v218, 120
        %v234 = vadd.s32 %v218, 128
        %v235 = vadd.s32 %v218, 136
        %v236 = vadd.s32 %v218, 144
        %v237 = vadd.s32 %v218, 152
        %v238 = vadd.s32 %v218, 160
        %v239 = vadd.s32 %v218, 168
        %v240 = vadd.s32 %v218, 176
        %v241 = vadd.s32 %v218, 184
        %v242 = vadd.s32 %v218, 192
        %v243 = vadd.s32 %v218, 200
        %v244 = vadd.s32 %v218, 208
        %v245 = vadd.s32 %v218, 216
        %v246 = vadd.s32 %v218, 224
        %v247 = vadd.s32 %v218, 232
        %v248 = vadd.s32 %v218, 240
        %v249 = vadd.s32 %v218, 248
        %v250 = vlaneseq
        %v251 = vshrl.u32 %v250, 7
        %v252 = vsub.s32 0, %v251
        %v253 = vrot.slane %v216, %v252
        %vm254 = vcmp.eq.s32.totalorder %v218, %v253
        %vm255 = vcmp.eq.s32.totalorder %v219, %v253
        %vm256 = vcmp.eq.s32.totalorder %v220, %v253
        %vm257 = vcmp.eq.s32.totalorder %v221, %v253
        %vm258 = vcmp.eq.s32.totalorder %v222, %v253
        %vm259 = vcmp.eq.s32.totalorder %v223, %v253
        %vm260 = vcmp.eq.s32.totalorder %v224, %v253
        %vm261 = vcmp.eq.s32.totalorder %v225, %v253
        %vm262 = vcmp.eq.s32.totalorder %v226, %v253
        %vm263 = vcmp.eq.s32.totalorder %v227, %v253
        %vm264 = vcmp.eq.s32.totalorder %v228, %v253
        %vm265 = vcmp.eq.s32.totalorder %v229, %v253
        %vm266 = vcmp.eq.s32.totalorder %v230, %v253
        %vm267 = vcmp.eq.s32.totalorder %v231, %v253
        %vm268 = vcmp.eq.s32.totalorder %v232, %v253
        %vm269 = vcmp.eq.s32.totalorder %v233, %v253
        %vm270 = vcmp.eq.s32.totalorder %v234, %v253
        %vm271 = vcmp.eq.s32.totalorder %v235, %v253
        %vm272 = vcmp.eq.s32.totalorder %v236, %v253
        %vm273 = vcmp.eq.s32.totalorder %v237, %v253
        %vm274 = vcmp.eq.s32.totalorder %v238, %v253
        %vm275 = vcmp.eq.s32.totalorder %v239, %v253
        %vm276 = vcmp.eq.s32.totalorder %v240, %v253
        %vm277 = vcmp.eq.s32.totalorder %v241, %v253
        %vm278 = vcmp.eq.s32.totalorder %v242, %v253
        %vm279 = vcmp.eq.s32.totalorder %v243, %v253
        %vm280 = vcmp.eq.s32.totalorder %v244, %v253
        %vm281 = vcmp.eq.s32.totalorder %v245, %v253
        %vm282 = vcmp.eq.s32.totalorder %v246, %v253
        %vm283 = vcmp.eq.s32.totalorder %v247, %v253
        %vm284 = vcmp.eq.s32.totalorder %v248, %v253
        %vm285 = vcmp.eq.s32.totalorder %v249, %v253
        %v286 = vsel %vm254, 1, 0
        %v287 = vsel %vm255, 1, 0
        %v288 = vsel %vm256, 1, 0
        %v289 = vsel %vm257, 1, 0
        %v290 = vsel %vm258, 1, 0
        %v291 = vsel %vm259, 1, 0
        %v292 = vsel %vm260, 1, 0
        %v293 = vsel %vm261, 1, 0
        %v294 = vsel %vm262, 1, 0
        %v295 = vsel %vm263, 1, 0
        %v296 = vsel %vm264, 1, 0
        %v297 = vsel %vm265, 1, 0
        %v298 = vsel %vm266, 1, 0
        %v299 = vsel %vm267, 1, 0
        %v300 = vsel %vm268, 1, 0
        %v301 = vsel %vm269, 1, 0
        %v302 = vsel %vm270, 1, 0
        %v303 = vsel %vm271, 1, 0
        %v304 = vsel %vm272, 1, 0
        %v305 = vsel %vm273, 1, 0
        %v306 = vsel %vm274, 1, 0
        %v307 = vsel %vm275, 1, 0
        %v308 = vsel %vm276, 1, 0
        %v309 = vsel %vm277, 1, 0
        %v310 = vsel %vm278, 1, 0
        %v311 = vsel %vm279, 1, 0
        %v312 = vsel %vm280, 1, 0
        %v313 = vsel %vm281, 1, 0
        %v314 = vsel %vm282, 1, 0
        %v315 = vsel %vm283, 1, 0
        %v316 = vsel %vm284, 1, 0
        %v317 = vsel %vm285, 1, 0
        %v318 = vcvt.s32.f32 %v286
        %v319 = vcvt.s32.f32 %v287
        %v320 = vcvt.s32.f32 %v288
        %v321 = vcvt.s32.f32 %v289
        %v322 = vcvt.s32.f32 %v290
        %v323 = vcvt.s32.f32 %v291
        %v324 = vcvt.s32.f32 %v292
        %v325 = vcvt.s32.f32 %v293
        %v326 = vcvt.s32.f32 %v294
        %v327 = vcvt.s32.f32 %v295
        %v328 = vcvt.s32.f32 %v296
        %v329 = vcvt.s32.f32 %v297
        %v330 = vcvt.s32.f32 %v298
        %v331 = vcvt.s32.f32 %v299
        %v332 = vcvt.s32.f32 %v300
        %v333 = vcvt.s32.f32 %v301
        %v334 = vcvt.s32.f32 %v302
        %v335 = vcvt.s32.f32 %v303
        %v336 = vcvt.s32.f32 %v304
        %v337 = vcvt.s32.f32 %v305
        %v338 = vcvt.s32.f32 %v306
        %v339 = vcvt.s32.f32 %v307
        %v340 = vcvt.s32.f32 %v308
        %v341 = vcvt.s32.f32 %v309
        %v342 = vcvt.s32.f32 %v310
        %v343 = vcvt.s32.f32 %v311
        %v344 = vcvt.s32.f32 %v312
        %v345 = vcvt.s32.f32 %v313
        %v346 = vcvt.s32.f32 %v314
        %v347 = vcvt.s32.f32 %v315
        %v348 = vcvt.s32.f32 %v316
        %v349 = vcvt.s32.f32 %v317
        %v350 = vld [vmem:[%s179] sm:$0xff]
        %v352 = vcombine.high %v350, %v350
        %354 = vmatprep.subr.mxu0 0.0
        %355 = vmatpush1.msra.mxu0 %v333
        %356 = vmatprep.subr.mxu0 0.0
        %357 = vmatpush1.msra.mxu0 %v332
        %358 = vmatprep.subr.mxu0 0.0
        %359 = vmatpush1.msra.mxu0 %v331
        %360 = vmatprep.subr.mxu0 0.0
        %361 = vmatpush1.msra.mxu0 %v330
        %362 = vmatprep.subr.mxu0 0.0
        %363 = vmatpush1.msra.mxu0 %v329
        %364 = vmatprep.subr.mxu0 0.0
        %365 = vmatpush1.msra.mxu0 %v328
        %366 = vmatprep.subr.mxu0 0.0
        %367 = vmatpush1.msra.mxu0 %v327
        %368 = vmatprep.subr.mxu0 0.0
        %369 = vmatpush1.msra.mxu0 %v326
        %370 = vmatprep.subr.mxu0 0.0
        %371 = vmatpush1.msra.mxu0 %v325
        %372 = vmatprep.subr.mxu0 0.0
        %373 = vmatpush1.msra.mxu0 %v324
        %374 = vmatprep.subr.mxu0 0.0
        %375 = vmatpush1.msra.mxu0 %v323
        %376 = vmatprep.subr.mxu0 0.0
        %377 = vmatpush1.msra.mxu0 %v322
        %378 = vmatprep.subr.mxu0 0.0
        %379 = vmatpush1.msra.mxu0 %v321
        %380 = vmatprep.subr.mxu0 0.0
        %381 = vmatpush1.msra.mxu0 %v320
        %382 = vmatprep.subr.mxu0 0.0
        %383 = vmatpush1.msra.mxu0 %v319
        %384 = vmatprep.subr.mxu0 0.0
        %385 = vmatpush1.msra.mxu0 %v318
        %386 = vmatprep.subr.mxu0 0.0
        %387 = vmatpush2.msra.mxu0 %v349
        %388 = vmatprep.subr.mxu0 0.0
        %389 = vmatpush2.msra.mxu0 %v348
        %390 = vmatprep.subr.mxu0 0.0
        %391 = vmatpush2.msra.mxu0 %v347
        %392 = vmatprep.subr.mxu0 0.0
        %393 = vmatpush2.msra.mxu0 %v346
        %394 = vmatprep.subr.mxu0 0.0
        %395 = vmatpush2.msra.mxu0 %v345
        %396 = vmatprep.subr.mxu0 0.0
        %397 = vmatpush2.msra.mxu0 %v344
        %398 = vmatprep.subr.mxu0 0.0
        %399 = vmatpush2.msra.mxu0 %v343
        %400 = vmatprep.subr.mxu0 0.0
        %401 = vmatpush2.msra.mxu0 %v342
        %402 = vmatprep.subr.mxu0 0.0
        %403 = vmatpush2.msra.mxu0 %v341
        %404 = vmatprep.subr.mxu0 0.0
        %405 = vmatpush2.msra.mxu0 %v340
        %406 = vmatprep.subr.mxu0 0.0
        %407 = vmatpush2.msra.mxu0 %v339
        %408 = vmatprep.subr.mxu0 0.0
        %409 = vmatpush2.msra.mxu0 %v338
        %410 = vmatprep.subr.mxu0 0.0
        %411 = vmatpush2.msra.mxu0 %v337
        %412 = vmatprep.subr.mxu0 0.0
        %413 = vmatpush2.msra.mxu0 %v336
        %414 = vmatprep.subr.mxu0 0.0
        %415 = vmatpush2.msra.mxu0 %v335
        %416 = vmatprep.subr.mxu0 0.0
        %417 = vmatpush2.msra.mxu0 %v334
        %418 = vmatprep.mubr.f32.mxu0 %v352
        %419 = vmatmul.mubr.f32.gmra.mxu0 %v350
        %v420 = vpop.f32.mrf.mxu0
        %v421 = vadd.f32 0.0, %v420
        %v422 = vpop.f32.mrf.mxu0
        %423 = vdwg.mxu0
        %424 = vst [vmem:[%s211] sm:$0xf] %v421
        %s425 = sand.u32 %s98, 1
        %s426 = scalar_lea.sflag [#allocation4], %s425
        %s427 = sand.u32 %s98, 1
        %s428 = smul.addr %s427, 4
        %s429 = scalar_lea.vmem [#allocation7], %s428
        // Predicated region
        $region37: #{tpu_custom_call.1} parent=27 // pred_check
          %p430 = pneg %p108
        $region38: #{tpu_custom_call.1} parent=27 // pred_check_branch
          %432 = sbr.rel (%p430) target = $region40
        $region39: #{tpu_custom_call.1} parent=27 // pred_region
          %s434 = ssub.s32 64, 64
          %435 = vsyncadd %s426, %s434
          %s436 = sadd.s32 %s27, %s26
          %s437 = smul.addr %s436, 64
          %s438 = scalar_lea.hbm %s2, %s437
          %s440 = sshll.u32 %s429, 4
          %s441 = int_to_ptr.vmem [resolvable:$true] %s440
          %443 = dma.vmem_to_hbm [thread:$0]  %s441, 64, %s438, %s426
        $region40: #{tpu_custom_call.1} parent=27 // pred_fallthru
          _
      $region28: #{tpu_custom_call.1} parent=5 // pred_fallthru
        _
      %p444 = scmp.le.s32.totalorder 2, %s17
      // Predicated region
      $region41: #{tpu_custom_call.1} parent=5 // pred_check
        %p445 = pneg %p444
      $region42: #{tpu_custom_call.1} parent=5 // pred_check_branch
        %447 = sbr.rel (%p445) target = $region44
      $region43: #{tpu_custom_call.1} parent=5 // pred_region
        %s448 = ssub.s32 %s17, 2
        // Predicated region
        $region45: #{tpu_custom_call.1} parent=43 // pred_check
          %p449 = pneg %p114
        $region46: #{tpu_custom_call.1} parent=43 // pred_check_branch
          %451 = sbr.rel (%p449) target = $region48
        $region47: #{tpu_custom_call.1} parent=43 // pred_region
          %s452 = sand.u32 %s99, 1
          %s453 = scalar_lea.sflag [#allocation4], %s452
          %s454 = sand.u32 %s99, 1
          %s455 = smul.addr %s454, 4
          %s456 = scalar_lea.vmem [#allocation7], %s455
          %457 = dma.done %s453, 64
        $region48: #{tpu_custom_call.1} parent=43 // pred_fallthru
          _
      $region44: #{tpu_custom_call.1} parent=5 // pred_fallthru
        _
    $region6: #{tpu_custom_call.1} parent=1 // loop_footer
      %s21 = sadd.s32 1, %s17
    $region7: #{tpu_custom_call.1} parent=1 // loop_footer_branch
      %16 = sbr.rel target = $region3
    $region8: #{tpu_custom_call.1} parent=1 // loop_exit
      _
    %458 = vsyncpa [#allocation3], 1
    %s459 = scalar_lea.sflag [#allocation3], 1
    %460 = vsyncpa %s459, 1
    %461 = vsyncpa [#allocation6], 1
    %s462 = scalar_lea.sflag [#allocation6], 1
    %463 = vsyncpa %s462, 1
    %464 = vsyncpa [#allocation4], 1
    %s465 = scalar_lea.sflag [#allocation4], 1
    %466 = vsyncpa %s465, 1

</llo_original>
